<compile_context>
chip_gen: v6e
topology: v6e:2x2x1
jax: 0.10.0
libtpu: 0.0.40
codegen_flags: <defaults>
</compile_context>

<pallas_src>
import jax
import jax.numpy as jnp
from jax.experimental import pallas as pl
from jax.experimental.pallas import tpu as pltpu


def _linear_kernel(w_ref, b_ref, x_ref, o_ref):
    # w_ref: (2,) SMEM, b_ref: (1,) SMEM,
    # x_ref: (2, BLOCK_ROWS, LANE_W) VMEM, o_ref: (BLOCK_ROWS, LANE_W) VMEM.
    w0 = w_ref[0]
    w1 = w_ref[1]
    b = b_ref[0]
    # y = w0 * x[:, 0] + w1 * x[:, 1] + b  -- pure elementwise VPU work on
    # sublane- and lane-dense vregs.
    o_ref[...] = (x_ref[0] * w0 + x_ref[1] * w1 + b).astype(o_ref.dtype)


def _geometry(n):
    """Pick (lane_width, block_rows, grid_steps) for a batch of n rows."""
    lane_w = 128
    while lane_w < 1024 and n > lane_w * 8:   # grow lanes first (lane-dense stores)
        lane_w *= 2
    rows_needed = pl.cdiv(n, lane_w)
    block_rows = min(256, max(8, pl.cdiv(rows_needed, 8) * 8))  # <= 256K elems/step
    steps = pl.cdiv(rows_needed, block_rows)
    return lane_w, block_rows, steps


def linear_pallas(x, w, b, *, min_pallas_batch=16384):
    """x: (N, 2), w: (1, 2), b: (1,) -> (N, 1). Same math as torch.nn.Linear(2, 1)."""
    n = x.shape[0]

    # Small-N fast path: below ~16K rows the kernel launch, relayout and the
    # minimum (8, 128) block dominate; plain JAX is faster and identical math.
    if n < min_pallas_batch:
        return x @ w.T.astype(x.dtype) + b.astype(x.dtype)

    lane_w, block_rows, steps = _geometry(n)
    rows = steps * block_rows
    n_pad = rows * lane_w

    # Feature-major, batch-on-lanes view: (2, rows, lane_w).  With
    # allow_input_fusion below, XLA is permitted to fuse this transpose/pad into
    # the pallas operand DMA instead of materializing an extra HBM pass.
    x_t = x.T                                   # (2, N)
    if n_pad != n:
        x_t = jnp.pad(x_t, ((0, 0), (0, n_pad - n)))
    x_r = x_t.reshape(2, rows, lane_w)

    w_flat = w.reshape(2).astype(x.dtype)
    b_flat = b.reshape(1).astype(x.dtype)

    itemsize = jnp.dtype(x.dtype).itemsize
    cost = pl.CostEstimate(
        flops=4 * n_pad,
        transcendentals=0,
        bytes_accessed=3 * n_pad * itemsize,    # 2 floats in + 1 float out per row
    )

    y = pl.pallas_call(
        _linear_kernel,
        out_shape=jax.ShapeDtypeStruct((rows, lane_w), x.dtype),
        grid=(steps,),
        in_specs=[
            pl.BlockSpec(memory_space=pltpu.SMEM),                     # w: (2,) scalars
            pl.BlockSpec(memory_space=pltpu.SMEM),                     # b: (1,) scalar
            pl.BlockSpec((2, block_rows, lane_w), lambda i: (0, i, 0)),  # x tile
        ],
        out_specs=pl.BlockSpec((block_rows, lane_w), lambda i: (i, 0)),  # y tile
        compiler_params=pltpu.CompilerParams(
            dimension_semantics=("parallel",),       # shard batch across TCs (v7x)
            vmem_limit_bytes=32 * 1024 * 1024,       # headroom; ~6 MiB actually used
            allow_input_fusion=[False, False, True],  # fuse transpose/pad into operand read
        ),
        cost_estimate=cost,
    )(w_flat, b_flat, x_r)

    return y.reshape(-1)[:n].reshape(n, 1)


if __name__ == "__main__":
    key = jax.random.PRNGKey(0)
    kx, kw, kb, kx2 = jax.random.split(key, 4)

    in_features, out_features = 2, 1

    # PyTorch-style uniform init bounds: 1/sqrt(fan_in).
    bound = 1.0 / (in_features ** 0.5)
    w = jax.random.uniform(kw, (out_features, in_features), jnp.float32, -bound, bound)
    b = jax.random.uniform(kb, (out_features,), jnp.float32, -bound, bound)

    # Primary small-shape demo (batch=8), forced through the Pallas path so the
    # kernel itself is compiled and executed on TPU.
    x = jax.random.normal(kx, (8, in_features), jnp.float32)
    y = linear_pallas(x, w, b, min_pallas_batch=0)
    jax.block_until_ready(y)
    y_ref = x @ w.T + b
    assert y.shape == (8, out_features)
    assert jnp.allclose(y, y_ref, atol=1e-6, rtol=1e-6), "mismatch vs reference (batch=8)"

    # Non-multiple batch: exercises the padding path of the Pallas kernel.
    x2 = jax.random.normal(kx2, (300, in_features), jnp.float32)
    y2 = linear_pallas(x2, w, b, min_pallas_batch=0)
    jax.block_until_ready(y2)
    y2_ref = x2 @ w.T + b
    assert y2.shape == (300, out_features)
    assert jnp.allclose(y2, y2_ref, atol=1e-6, rtol=1e-6), "mismatch vs reference (batch=300)"

    # Default wrapper: tiny batches take the plain-JAX fast path (same math).
    y_fast = linear_pallas(x, w, b)
    assert jnp.allclose(y_fast, y_ref, atol=1e-6, rtol=1e-6), "fast-path mismatch"

    print("KERNEL_OK")
</pallas_src>

<mosaic_0001>
module attributes {stable_mosaic.version = 11 : i64} {
  func.func @_linear_kernel(%arg0: i32, %arg1: memref<2xf32, #tpu.memory_space<smem>>, %arg2: memref<1xf32, #tpu.memory_space<smem>>, %arg3: memref<2x8x128xf32, #tpu.memory_space<vmem>>, %arg4: memref<8x128xf32, #tpu.memory_space<vmem>>) attributes {dimension_semantics = [#tpu.dimension_semantics<parallel>], iteration_bounds = array<i64: 1>, scalar_prefetch = 0 : i64, scratch_operands = 0 : i64, tpu.core_type = #tpu.core_type<tc>, window_params = [{transform_indices = @transform_0, window_bounds = array<i64: 2>}, {transform_indices = @transform_1, window_bounds = array<i64: 1>}, {transform_indices = @transform_2, window_bounds = array<i64: 2, 8, 128>}, {transform_indices = @transform_3, window_bounds = array<i64: 8, 128>}]} {
    %c0 = arith.constant 0 : index
    %0 = memref.load %arg1[%c0] : memref<2xf32, #tpu.memory_space<smem>>
    %c1 = arith.constant 1 : index
    %1 = memref.load %arg1[%c1] : memref<2xf32, #tpu.memory_space<smem>>
    %c0_0 = arith.constant 0 : index
    %2 = memref.load %arg2[%c0_0] : memref<1xf32, #tpu.memory_space<smem>>
    %c0_1 = arith.constant 0 : index
    %c0_2 = arith.constant 0 : index
    %c0_3 = arith.constant 0 : index
    %3 = vector.load %arg3[%c0_1, %c0_2, %c0_3] : memref<2x8x128xf32, #tpu.memory_space<vmem>>, vector<1x8x128xf32>
    %4 = vector.shape_cast %3 : vector<1x8x128xf32> to vector<8x128xf32>
    %5 = vector.broadcast %0 : f32 to vector<8x128xf32>
    %6 = arith.mulf %4, %5 : vector<8x128xf32>
    %c1_4 = arith.constant 1 : index
    %c0_5 = arith.constant 0 : index
    %c0_6 = arith.constant 0 : index
    %7 = vector.load %arg3[%c1_4, %c0_5, %c0_6] : memref<2x8x128xf32, #tpu.memory_space<vmem>>, vector<1x8x128xf32>
    %8 = vector.shape_cast %7 : vector<1x8x128xf32> to vector<8x128xf32>
    %9 = vector.broadcast %1 : f32 to vector<8x128xf32>
    %10 = arith.mulf %8, %9 : vector<8x128xf32>
    %11 = arith.addf %6, %10 : vector<8x128xf32>
    %12 = vector.broadcast %2 : f32 to vector<8x128xf32>
    %13 = arith.addf %11, %12 : vector<8x128xf32>
    %c0_7 = arith.constant 0 : index
    %c0_8 = arith.constant 0 : index
    %14 = vector.load %arg4[%c0_7, %c0_8] : memref<8x128xf32, #tpu.memory_space<vmem>>, vector<8x128xf32>
    tpu.vector_store %arg4[%c0_7, %c0_8], %13 {strides = array<i32>} : memref<8x128xf32, #tpu.memory_space<vmem>>, vector<8x128xf32>,
    return
  }
  func.func @transform_0(%arg0: i32) -> i32 {
    %c0_i32 = arith.constant 0 : i32
    %c0_i32_0 = arith.constant 0 : i32
    return %c0_i32 : i32
  }
  func.func @transform_1(%arg0: i32) -> i32 {
    %c0_i32 = arith.constant 0 : i32
    %c0_i32_0 = arith.constant 0 : i32
    return %c0_i32 : i32
  }
  func.func @transform_2(%arg0: i32) -> (i32, i32, i32) {
    %c0_i32 = arith.constant 0 : i32
    %c0_i32_0 = arith.constant 0 : i32
    %c0_i32_1 = arith.constant 0 : i32
    return %c0_i32, %arg0, %c0_i32_0 : i32, i32, i32
  }
  func.func @transform_3(%arg0: i32) -> (i32, i32) {
    %c0_i32 = arith.constant 0 : i32
    %c0_i32_0 = arith.constant 0 : i32
    return %arg0, %c0_i32 : i32, i32
  }
}

</mosaic_0001>

<llo_original>
// kernel: tpu_custom_call.1
$region0: #{tpu_custom_call.1}
  #allocation0 [shape = 'u32[]', space=smem, size = 0x4, offset = 0x4, fixed_abs, tag = 'smem constant byte address 0x4 - core index']
  #allocation1 [shape = 'u32[144,128]{1,0:T(1,128)}', space=vmem, size = 0x12000, scoped, tag = 'internal scratch']
  #allocation2 [shape = 'f32[1]{0:T(128)S(6)}', space=smem, size = 0x200, scoped, tag = 'scoped memory for tpu_custom_call.1']
  %s0 = inlined_call_operand.vmem [shape: f32[2], index: 0, kind: input, shape index: {}]
  %s1 = inlined_call_operand.<no memory space> [shape: f32[1], index: 1, kind: input, shape index: {}]
  %s2 = inlined_call_operand.hbm [shape: f32[2,8,128], index: 2, kind: input, shape index: {}]
  %s3 = inlined_call_operand.hbm [shape: f32[8,128], index: 3, kind: output, shape index: {}]
  %s4 = sld [smem:[#allocation0]]
  $region30: #{tpu_custom_call.1} parent=0
    _
  %s6 = ssub.s32 1, %s4
  %s7 = scalar_select 0, %s6, %s4
  %8 = sst [smem:[#allocation2]] %s1
  $region1: #{tpu_custom_call.1} parent=0
    #allocation3 [shape = 'u8[512]{0}', space=smem, size = 0x200, scoped, tag = 'input window, operand 0, single buffered']
    #allocation4 [shape = 's32[1]{0}', space=sflag, size = 0x4, scoped, tag = 'scoped memory for tpu_custom_call.1']
    #allocation5 [shape = 's32[1]{0}', space=sflag, size = 0x4, scoped, tag = 'scoped memory for tpu_custom_call.1']
    #allocation6 [shape = 's32[1]{0}', space=sflag, size = 0x4, scoped, tag = 'scoped memory for tpu_custom_call.1']
    #allocation7 [shape = 'u8[8192]{0}', space=vmem, size = 0x2000, scoped, tag = 'input window, operand 2, single buffered']
    #allocation8 [shape = 'u8[4096]{0}', space=vmem, size = 0x1000, scoped, tag = 'output window, operand 0, single buffered']
    %9 = vsyncpa [#allocation6], 0
    %10 = vsyncpa [#allocation4], 0
    %11 = vsyncpa [#allocation5], 0
    // Predicated region
    $region2: #{tpu_custom_call.1} parent=1 // pred_check
      _
    $region3: #{tpu_custom_call.1} parent=1 // pred_check_branch
      %13 = sbr.rel (0) target = $region5
    $region4: #{tpu_custom_call.1} parent=1 // pred_region
      %s15 = ssub.s32 16, 16
      %16 = vsyncadd [#allocation6], %s15
      %s18 = sshll.u32 %s0, 4
      %s19 = int_to_ptr.vmem [resolvable:$true] %s18
      %21 = dma.vmem_to_smem %s19, 16, [#allocation3], [#allocation6]
    $region5: #{tpu_custom_call.1} parent=1 // pred_fallthru
      _
    // Predicated region
    $region6: #{tpu_custom_call.1} parent=1 // pred_check
      _
    $region7: #{tpu_custom_call.1} parent=1 // pred_check_branch
      %23 = sbr.rel (0) target = $region9
    $region8: #{tpu_custom_call.1} parent=1 // pred_region
      _
    $region9: #{tpu_custom_call.1} parent=1 // pred_fallthru
      _
    // Predicated region
    $region10: #{tpu_custom_call.1} parent=1 // pred_check
      _
    $region11: #{tpu_custom_call.1} parent=1 // pred_check_branch
      %25 = sbr.rel (0) target = $region13
    $region12: #{tpu_custom_call.1} parent=1 // pred_region
      %s27 = ssub.s32 256, 256
      %28 = vsyncadd [#allocation4], %s27
      %s29 = sshll.u32 [#allocation7], 4
      %s30 = int_to_ptr.vmem [resolvable:$true] %s29
      %35 = dma.hbm_to_vmem [thread:$0]  %s2, 256, %s30, [#allocation4], 128, 128, 8
    $region13: #{tpu_custom_call.1} parent=1 // pred_fallthru
      _
    // Predicated region
    $region14: #{tpu_custom_call.1} parent=1 // pred_check
      _
    $region15: #{tpu_custom_call.1} parent=1 // pred_check_branch
      %37 = sbr.rel (0) target = $region17
    $region16: #{tpu_custom_call.1} parent=1 // pred_region
      %38 = dma.done [#allocation6], 16
    $region17: #{tpu_custom_call.1} parent=1 // pred_fallthru
      _
    // Predicated region
    $region18: #{tpu_custom_call.1} parent=1 // pred_check
      _
    $region19: #{tpu_custom_call.1} parent=1 // pred_check_branch
      %40 = sbr.rel (0) target = $region21
    $region20: #{tpu_custom_call.1} parent=1 // pred_region
      %41 = dma.done [#allocation4], 256
    $region21: #{tpu_custom_call.1} parent=1 // pred_fallthru
      _
    %42 = sfence
    %s43 = sld [smem:[#allocation3]]
    %s44 = sld [smem:[#allocation3 + $0x1]]
    %s45 = sld [smem:[#allocation2]]
    %v46 = vld [vmem:[#allocation7] sm:$0xff]
    %v47 = vstv %s43
    %v48 = vmul.f32 %v46, %v47
    %s49 = scalar_lea.vmem [#allocation7], 8
    %v50 = vld [vmem:[%s49] sm:$0xff]
    %v51 = vstv %s44
    %v52 = vmul.f32 %v50, %v51
    %v53 = vadd.f32 %v48, %v52
    %v54 = vstv %s45
    %v55 = vadd.f32 %v53, %v54
    %56 = vst [vmem:[#allocation8] sm:$0xff] %v55
    // Predicated region
    $region22: #{tpu_custom_call.1} parent=1 // pred_check
      _
    $region23: #{tpu_custom_call.1} parent=1 // pred_check_branch
      %58 = sbr.rel (0) target = $region25
    $region24: #{tpu_custom_call.1} parent=1 // pred_region
      %s60 = ssub.s32 128, 128
      %61 = vsyncadd [#allocation5], %s60
      %s63 = sshll.u32 [#allocation8], 4
      %s64 = int_to_ptr.vmem [resolvable:$true] %s63
      %66 = dma.vmem_to_hbm [thread:$0]  %s64, 128, %s3, [#allocation5]
    $region25: #{tpu_custom_call.1} parent=1 // pred_fallthru
      _
    // Predicated region
    $region26: #{tpu_custom_call.1} parent=1 // pred_check
      _
    $region27: #{tpu_custom_call.1} parent=1 // pred_check_branch
      %68 = sbr.rel (0) target = $region29
    $region28: #{tpu_custom_call.1} parent=1 // pred_region
      %69 = dma.done [#allocation5], 128
    $region29: #{tpu_custom_call.1} parent=1 // pred_fallthru
      _
    %70 = vsyncpa [#allocation4], 1
    %71 = vsyncpa [#allocation5], 1
    %72 = vsyncpa [#allocation6], 1

</llo_original>
